<compile_context>
chip_gen: v7x
topology: tpu7x:2x2x1
jax: 0.10.0
libtpu: 0.0.40
codegen_flags: <defaults>
</compile_context>

<pallas_src>
import functools
import math

import jax
import jax.numpy as jnp
from jax.experimental import pallas as pl
from jax.experimental.pallas import tpu as pltpu


def _fop_critic_kernel(x_ref, w1o_ref, bias1_ref, w2_ref, b2_ref, w3_ref,
                       b3_ref, q_ref, *, compute_dtype):
    # In-kernel operand cast (no-op for f32); keeps the HBM stream in the
    # producer's dtype and still feeds the MXU at full bf16 rate.
    x = x_ref[...].astype(compute_dtype)                 # (tile_m, obs_dim)

    # fc1 on the observation part of the input (MXU, f32 accumulation).
    h1 = jnp.dot(x, w1o_ref[...], preferred_element_type=jnp.float32)
    # Pre-folded per-agent bias slab: bias1[r] = W1[obs_dim + (r % n_agents)] + b1.
    h1 = jnp.maximum(h1 + bias1_ref[...], 0.0)           # f32 ReLU (v5e-safe)

    h2 = jnp.dot(h1.astype(w2_ref.dtype), w2_ref[...],
                 preferred_element_type=jnp.float32)
    h2 = jnp.maximum(h2 + b2_ref[...], 0.0)

    q = jnp.dot(h2.astype(w3_ref.dtype), w3_ref[...],
                preferred_element_type=jnp.float32)
    q_ref[...] = (q + b3_ref[...]).astype(q_ref.dtype)


@functools.partial(jax.jit,
                   static_argnames=("n_agents", "tile_m", "compute_dtype"))
def fop_critic_forward(obs_2d, params, *, n_agents, tile_m=4096,
                       compute_dtype=jnp.float32):
    """obs_2d: (M, obs_dim) with rows laid out (bs, max_t, n_agents).

    Returns (M, n_actions) float32.  Equivalent to FOPCritic.forward applied to
    _build_inputs(obs) (obs concatenated with the per-agent one-hot), but the
    one-hot block of fc1 is folded into a per-agent bias instead of being
    materialised in HBM:
        [obs | onehot_a] @ W1 + b1 == obs @ W1[:obs_dim] + (W1[obs_dim+a] + b1)
    """
    w1, b1, w2, b2, w3, b3 = params                      # w1: (obs_dim+n_agents, H1)
    M, obs_dim = obs_2d.shape
    H1 = w1.shape[1]
    H2 = w2.shape[1]
    A = w3.shape[1]
    assert w1.shape[0] == obs_dim + n_agents

    # Tile granularity: multiple of 8 (sublane constraint) AND of n_agents
    # (so the precomputed bias slab repeats identically across tiles).
    base = (8 * n_agents) // math.gcd(8, n_agents)       # lcm(8, n_agents)
    tm = max(base, (tile_m // base) * base)
    # Guarantee >= 2 grid steps (v7x megacore: both TensorCores get work) and
    # bound wasted ragged-tile compute when M is small.
    half_rows = (((M + 1) // 2) + base - 1) // base * base
    tm = min(tm, half_rows)
    n_tiles = pl.cdiv(M, tm)                             # ragged last tile OK

    # Weights: tiny + VMEM-resident, so casting them in the wrapper is free.
    w1_obs = w1[:obs_dim].astype(compute_dtype)          # (obs_dim, H1)
    b1_agent = (w1[obs_dim:] + jnp.reshape(b1, (1, -1))).astype(jnp.float32)
    # (tm, H1) bias slab; valid because tm % n_agents == 0.
    bias1 = b1_agent[jnp.arange(tm) % n_agents]          # (tm, H1) f32
    w2c = w2.astype(compute_dtype)
    w3c = w3.astype(compute_dtype)
    b2f = jnp.reshape(b2, (1, H2)).astype(jnp.float32)
    b3f = jnp.reshape(b3, (1, A)).astype(jnp.float32)

    def const2d(shape):
        # Full-extent block, constant index => single DMA, pipeliner keeps it
        # resident across all grid steps.
        return pl.BlockSpec(shape, lambda i: (0, 0))

    kernel = functools.partial(_fop_critic_kernel, compute_dtype=compute_dtype)

    q = pl.pallas_call(
        kernel,
        out_shape=jax.ShapeDtypeStruct((M, A), jnp.float32),
        grid_spec=pltpu.PrefetchScalarGridSpec(
            num_scalar_prefetch=0,
            grid=(n_tiles,),
            in_specs=[
                pl.BlockSpec((tm, obs_dim), lambda i: (i, 0)),  # obs rows
                const2d((obs_dim, H1)),   # W1[:obs_dim]
                const2d((tm, H1)),        # per-agent fc1 bias slab
                const2d((H1, H2)),        # W2
                const2d((1, H2)),         # b2
                const2d((H2, A)),         # W3
                const2d((1, A)),          # b3
            ],
            out_specs=pl.BlockSpec((tm, A), lambda i: (i, 0)),
        ),
        compiler_params=pltpu.CompilerParams(
            dimension_semantics=("parallel",)),
    )(obs_2d, w1_obs, bias1, w2c, b2f, w3c, b3f)

    return q


def init_linear(key, fan_in, fan_out):
    """PyTorch nn.Linear default init: U(-1/sqrt(fan_in), 1/sqrt(fan_in))."""
    kw, kb = jax.random.split(key)
    bound = 1.0 / jnp.sqrt(fan_in)
    # Stored as (in, out) so forward is x @ W + b (== PyTorch x @ W.T + b).
    w = jax.random.uniform(kw, (fan_in, fan_out), jnp.float32, -bound, bound)
    b = jax.random.uniform(kb, (1, fan_out), jnp.float32, -bound, bound)
    return w, b


if __name__ == "__main__":
    # Small synthetic config (mirrors scheme/args of FOPCritic).
    bs, max_t = 2, 8
    n_agents = 4
    n_actions = 8
    obs_dim = 32
    input_shape = obs_dim + n_agents       # _get_input_shape

    key = jax.random.PRNGKey(0)
    k_obs, k1, k2, k3 = jax.random.split(key, 4)

    obs = jax.random.normal(k_obs, (bs, max_t, n_agents, obs_dim), jnp.float32)
    M = bs * max_t * n_agents
    obs_2d = obs.reshape(M, obs_dim)

    # fc1: input_shape->64, fc2: 64->64, fc3: 64->n_actions.
    w1, b1 = init_linear(k1, input_shape, 64)
    w2, b2 = init_linear(k2, 64, 64)
    w3, b3 = init_linear(k3, 64, n_actions)
    params = (w1, b1, w2, b2, w3, b3)

    # f32 path (exact semantics of the original module).
    q2d = fop_critic_forward(obs_2d, params, n_agents=n_agents)
    q = q2d.reshape(bs, max_t, n_agents, n_actions)
    jax.block_until_ready(q)

    # Reference: the original _build_inputs concat + 3-layer MLP in plain JAX.
    eye = jnp.eye(n_agents, dtype=jnp.float32)
    onehot = jnp.broadcast_to(eye[None, None], (bs, max_t, n_agents, n_agents))
    inputs_2d = jnp.concatenate([obs, onehot], axis=-1).reshape(M, input_shape)
    h1 = jnp.maximum(inputs_2d @ w1 + b1, 0.0)
    h2 = jnp.maximum(h1 @ w2 + b2, 0.0)
    q_ref = (h2 @ w3 + b3).reshape(bs, max_t, n_agents, n_actions)
    assert jnp.allclose(q, q_ref, atol=1e-4, rtol=1e-4), "mismatch vs reference"

    # bf16 MXU operand fast path (safe on v5e/v6e/v7x: biases, ReLU and
    # accumulation stay f32; only the MXU operands are bf16).
    q_bf = fop_critic_forward(obs_2d, params, n_agents=n_agents,
                              compute_dtype=jnp.bfloat16)
    jax.block_until_ready(q_bf)
    assert float(jnp.max(jnp.abs(q_bf - q2d))) < 5e-2, "bf16 path diverged"

    # Exercise a non-divisible M (ragged last tile) to confirm edge-block
    # output masking is correct on this Pallas/Mosaic version.
    M_odd = M - 3
    q_odd = fop_critic_forward(obs_2d[:M_odd], params, n_agents=n_agents)
    jax.block_until_ready(q_odd)
    assert jnp.allclose(q_odd, q2d[:M_odd], atol=1e-4, rtol=1e-4), "ragged tile mismatch"

    print("KERNEL_OK")
</pallas_src>

<mosaic_0001>
module attributes {stable_mosaic.version = 11 : i64} {
  func.func @_fop_critic_kernel(%arg0: i32, %arg1: memref<32x32xf32, #tpu.memory_space<vmem>>, %arg2: memref<32x64xf32, #tpu.memory_space<vmem>>, %arg3: memref<32x64xf32, #tpu.memory_space<vmem>>, %arg4: memref<64x64xf32, #tpu.memory_space<vmem>>, %arg5: memref<1x64xf32, #tpu.memory_space<vmem>>, %arg6: memref<64x8xf32, #tpu.memory_space<vmem>>, %arg7: memref<1x8xf32, #tpu.memory_space<vmem>>, %arg8: memref<32x8xf32, #tpu.memory_space<vmem>>) attributes {dimension_semantics = [#tpu.dimension_semantics<parallel>], iteration_bounds = array<i64: 2>, scalar_prefetch = 0 : i64, scratch_operands = 0 : i64, tpu.core_type = #tpu.core_type<tc>, window_params = [{transform_indices = @transform_0, window_bounds = array<i64: 32, 32>}, {pipeline_mode = #tpu.pipeline_mode<synchronous>, transform_indices = @transform_1, window_bounds = array<i64: 32, 64>}, {pipeline_mode = #tpu.pipeline_mode<synchronous>, transform_indices = @transform_2, window_bounds = array<i64: 32, 64>}, {pipeline_mode = #tpu.pipeline_mode<synchronous>, transform_indices = @transform_3, window_bounds = array<i64: 64, 64>}, {pipeline_mode = #tpu.pipeline_mode<synchronous>, transform_indices = @transform_4, window_bounds = array<i64: 1, 64>}, {pipeline_mode = #tpu.pipeline_mode<synchronous>, transform_indices = @transform_5, window_bounds = array<i64: 64, 8>}, {pipeline_mode = #tpu.pipeline_mode<synchronous>, transform_indices = @transform_6, window_bounds = array<i64: 1, 8>}, {transform_indices = @transform_7, window_bounds = array<i64: 32, 8>}]} {
    %c0 = arith.constant 0 : index
    %c0_0 = arith.constant 0 : index
    %0 = vector.load %arg1[%c0, %c0_0] : memref<32x32xf32, #tpu.memory_space<vmem>>, vector<32x32xf32>
    %c0_1 = arith.constant 0 : index
    %c0_2 = arith.constant 0 : index
    %1 = vector.load %arg2[%c0_1, %c0_2] : memref<32x64xf32, #tpu.memory_space<vmem>>, vector<32x64xf32>
    %cst = arith.constant dense<0.000000e+00> : vector<32x64xf32>
    %2 = tpu.matmul %0, %1, %cst {dimension_numbers = #tpu.dot_dimension_numbers<[1], [0], [0], [1], [0, 0, 1, 1], [], []>} : vector<32x32xf32>, vector<32x64xf32>, vector<32x64xf32> -> vector<32x64xf32>
    %c0_3 = arith.constant 0 : index
    %c0_4 = arith.constant 0 : index
    %3 = vector.load %arg3[%c0_3, %c0_4] : memref<32x64xf32, #tpu.memory_space<vmem>>, vector<32x64xf32>
    %4 = arith.addf %2, %3 : vector<32x64xf32>
    %cst_5 = arith.constant 0.000000e+00 : f32
    %5 = vector.broadcast %cst_5 : f32 to vector<32x64xf32>
    %6 = arith.maximumf %4, %5 : vector<32x64xf32>
    %c0_6 = arith.constant 0 : index
    %c0_7 = arith.constant 0 : index
    %7 = vector.load %arg4[%c0_6, %c0_7] : memref<64x64xf32, #tpu.memory_space<vmem>>, vector<64x64xf32>
    %cst_8 = arith.constant dense<0.000000e+00> : vector<32x64xf32>
    %8 = tpu.matmul %6, %7, %cst_8 {dimension_numbers = #tpu.dot_dimension_numbers<[1], [0], [0], [1], [0, 0, 1, 1], [], []>} : vector<32x64xf32>, vector<64x64xf32>, vector<32x64xf32> -> vector<32x64xf32>
    %c0_9 = arith.constant 0 : index
    %c0_10 = arith.constant 0 : index
    %9 = vector.load %arg5[%c0_9, %c0_10] : memref<1x64xf32, #tpu.memory_space<vmem>>, vector<1x64xf32>
    %10 = vector.broadcast %9 : vector<1x64xf32> to vector<32x64xf32>
    %11 = arith.addf %8, %10 : vector<32x64xf32>
    %cst_11 = arith.constant 0.000000e+00 : f32
    %12 = vector.broadcast %cst_11 : f32 to vector<32x64xf32>
    %13 = arith.maximumf %11, %12 : vector<32x64xf32>
    %c0_12 = arith.constant 0 : index
    %c0_13 = arith.constant 0 : index
    %14 = vector.load %arg6[%c0_12, %c0_13] : memref<64x8xf32, #tpu.memory_space<vmem>>, vector<64x8xf32>
    %cst_14 = arith.constant dense<0.000000e+00> : vector<32x8xf32>
    %15 = tpu.matmul %13, %14, %cst_14 {dimension_numbers = #tpu.dot_dimension_numbers<[1], [0], [0], [1], [0, 0, 1, 1], [], []>} : vector<32x64xf32>, vector<64x8xf32>, vector<32x8xf32> -> vector<32x8xf32>
    %c0_15 = arith.constant 0 : index
    %c0_16 = arith.constant 0 : index
    %16 = vector.load %arg7[%c0_15, %c0_16] : memref<1x8xf32, #tpu.memory_space<vmem>>, vector<1x8xf32>
    %17 = vector.broadcast %16 : vector<1x8xf32> to vector<32x8xf32>
    %18 = arith.addf %15, %17 : vector<32x8xf32>
    %c0_17 = arith.constant 0 : index
    %c0_18 = arith.constant 0 : index
    %19 = vector.load %arg8[%c0_17, %c0_18] : memref<32x8xf32, #tpu.memory_space<vmem>>, vector<32x8xf32>
    tpu.vector_store %arg8[%c0_17, %c0_18], %18 {strides = array<i32>} : memref<32x8xf32, #tpu.memory_space<vmem>>, vector<32x8xf32>,
    return
  }
  func.func @transform_0(%arg0: i32) -> (i32, i32) {
    %c0_i32 = arith.constant 0 : i32
    %c0_i32_0 = arith.constant 0 : i32
    return %arg0, %c0_i32 : i32, i32
  }
  func.func @transform_1(%arg0: i32) -> (i32, i32) {
    %c0_i32 = arith.constant 0 : i32
    %c0_i32_0 = arith.constant 0 : i32
    %c0_i32_1 = arith.constant 0 : i32
    return %c0_i32, %c0_i32_0 : i32, i32
  }
  func.func @transform_2(%arg0: i32) -> (i32, i32) {
    %c0_i32 = arith.constant 0 : i32
    %c0_i32_0 = arith.constant 0 : i32
    %c0_i32_1 = arith.constant 0 : i32
    return %c0_i32, %c0_i32_0 : i32, i32
  }
  func.func @transform_3(%arg0: i32) -> (i32, i32) {
    %c0_i32 = arith.constant 0 : i32
    %c0_i32_0 = arith.constant 0 : i32
    %c0_i32_1 = arith.constant 0 : i32
    return %c0_i32, %c0_i32_0 : i32, i32
  }
  func.func @transform_4(%arg0: i32) -> (i32, i32) {
    %c0_i32 = arith.constant 0 : i32
    %c0_i32_0 = arith.constant 0 : i32
    %c0_i32_1 = arith.constant 0 : i32
    return %c0_i32, %c0_i32_0 : i32, i32
  }
  func.func @transform_5(%arg0: i32) -> (i32, i32) {
    %c0_i32 = arith.constant 0 : i32
    %c0_i32_0 = arith.constant 0 : i32
    %c0_i32_1 = arith.constant 0 : i32
    return %c0_i32, %c0_i32_0 : i32, i32
  }
  func.func @transform_6(%arg0: i32) -> (i32, i32) {
    %c0_i32 = arith.constant 0 : i32
    %c0_i32_0 = arith.constant 0 : i32
    %c0_i32_1 = arith.constant 0 : i32
    return %c0_i32, %c0_i32_0 : i32, i32
  }
  func.func @transform_7(%arg0: i32) -> (i32, i32) {
    %c0_i32 = arith.constant 0 : i32
    %c0_i32_0 = arith.constant 0 : i32
    return %arg0, %c0_i32 : i32, i32
  }
}

</mosaic_0001>

<llo_original>
// kernel: fop_critic_forward.1
$region0: #{fop_critic_forward.1}
  #allocation0 [shape = 'u32[]', space=smem, size = 0x4, offset = 0x4, fixed_abs, tag = 'smem constant byte address 0x4 - core index']
  #allocation1 [shape = 'u32[144,128]{1,0:T(1,128)}', space=vmem, size = 0x12000, scoped, tag = 'internal scratch']
  %s0 = inlined_call_operand.vmem [shape: f32[64,32], index: 0, kind: input, shape index: {}]
  %s1 = inlined_call_operand.vmem [shape: f32[32,64], index: 1, kind: input, shape index: {}]
  %s2 = inlined_call_operand.vmem [shape: f32[32,64], index: 2, kind: input, shape index: {}]
  %s3 = inlined_call_operand.vmem [shape: f32[64,64], index: 3, kind: input, shape index: {}]
  %s4 = inlined_call_operand.vmem [shape: f32[1,64], index: 4, kind: input, shape index: {}]
  %s5 = inlined_call_operand.vmem [shape: f32[64,8], index: 5, kind: input, shape index: {}]
  %s6 = inlined_call_operand.vmem [shape: f32[1,8], index: 6, kind: input, shape index: {}]
  %s7 = inlined_call_operand.vmem [shape: f32[64,8], index: 7, kind: output, shape index: {}]
  %s8 = sld [smem:[#allocation0]]
  $region61: #{fop_critic_forward.1} parent=0
    _
  %s10 = ssub.s32 1, %s8
  %s11 = scalar_select 0, %s10, %s8
  loop: start=0, step=1, limit=4
  $region2: #{fop_critic_forward.1} parent=0 // loop_pre_header
    _
  $region3: #{fop_critic_forward.1} parent=0 // loop_header
    %s13 = sphi 0, %s17
    %p14 = scmp.ge.s32.totalorder %s13, 4
    %s23 = sphi 0, %s25
    %s26 = sphi 0, %s23
    %s27 = sphi 0, %s26
    %s43 = sphi 0, %s27
    %s47 = sphi 0, %s47
    %s49 = sphi 0, %s47
    %s50 = sphi 0, %s49
    %s64 = sphi 0, %s50
    %s68 = sphi 0, %s68
    %s70 = sphi 0, %s68
    %s71 = sphi 0, %s70
    %s85 = sphi 0, %s71
    %s89 = sphi 0, %s89
    %s91 = sphi 0, %s89
    %s92 = sphi 0, %s91
    %s106 = sphi 0, %s92
    %s110 = sphi 0, %s110
    %s112 = sphi 0, %s110
    %s113 = sphi 0, %s112
    %s127 = sphi 0, %s113
    %s131 = sphi 0, %s131
    %s133 = sphi 0, %s131
    %s134 = sphi 0, %s133
    %s148 = sphi 0, %s134
    %s152 = sphi 0, %s152
    %s154 = sphi 0, %s152
    %s155 = sphi 0, %s154
    %s169 = sphi 0, %s155
    %s175 = sphi 0, %s177
    %s178 = sphi 0, %s175
    %s179 = sphi 0, %s178
    %s195 = sphi 0, %s179
  $region4: #{fop_critic_forward.1} parent=0 // loop_header_branch
    %16 = sbr.rel (%p14) target = $region8
  $region5: #{fop_critic_forward.1} parent=0 // loop_body
    %s18 = ssub.s32 %s13, 1
    %s19 = ssub.s32 %s13, 2
    %s20 = sadd.s32 %s13, 1
    %s21 = ssub.s32 %s13, %s20
    %p22 = scmp.eq.s32.totalorder %s21, 0
    %s24 = sadd.s32 %s23, 1
    %s25 = scalar_select %p22, %s23, %s24
    %p28 = pneg %p22
    %p29 = scmp.eq.s32.totalorder %s13, 1
    %p30 = por %p28, %p29
    %p31 = scmp.ne.s32.totalorder %s23, %s26
    %p32 = scmp.eq.s32.totalorder %s13, 0
    %p33 = por %p31, %p32
    %p34 = scmp.ne.s32.totalorder %s23, %s26
    %p35 = scmp.eq.s32.totalorder %s18, 1
    %p36 = por %p34, %p35
    %p37 = scmp.ne.s32.totalorder %s26, %s27
    %p38 = scmp.eq.s32.totalorder %s18, 0
    %p39 = por %p37, %p38
    %p40 = scmp.ne.s32.totalorder %s26, %s27
    %p41 = scmp.eq.s32.totalorder %s19, 1
    %p42 = por %p40, %p41
    %p44 = scmp.ne.s32.totalorder %s27, %s43
    %p45 = scmp.eq.s32.totalorder %s19, 0
    %p46 = por %p44, %p45
    %s48 = sadd.s32 %s47, 1
    %p51 = scmp.eq.s32.totalorder %s13, 1
    %p52 = scmp.ne.s32.totalorder %s47, %s49
    %p53 = scmp.eq.s32.totalorder %s13, 0
    %p54 = por %p52, %p53
    %p55 = scmp.ne.s32.totalorder %s47, %s49
    %p56 = scmp.eq.s32.totalorder %s18, 1
    %p57 = por %p55, %p56
    %p58 = scmp.ne.s32.totalorder %s49, %s50
    %p59 = scmp.eq.s32.totalorder %s18, 0
    %p60 = por %p58, %p59
    %p61 = scmp.ne.s32.totalorder %s49, %s50
    %p62 = scmp.eq.s32.totalorder %s19, 1
    %p63 = por %p61, %p62
    %p65 = scmp.ne.s32.totalorder %s50, %s64
    %p66 = scmp.eq.s32.totalorder %s19, 0
    %p67 = por %p65, %p66
    %s69 = sadd.s32 %s68, 1
    %p72 = scmp.eq.s32.totalorder %s13, 1
    %p73 = scmp.ne.s32.totalorder %s68, %s70
    %p74 = scmp.eq.s32.totalorder %s13, 0
    %p75 = por %p73, %p74
    %p76 = scmp.ne.s32.totalorder %s68, %s70
    %p77 = scmp.eq.s32.totalorder %s18, 1
    %p78 = por %p76, %p77
    %p79 = scmp.ne.s32.totalorder %s70, %s71
    %p80 = scmp.eq.s32.totalorder %s18, 0
    %p81 = por %p79, %p80
    %p82 = scmp.ne.s32.totalorder %s70, %s71
    %p83 = scmp.eq.s32.totalorder %s19, 1
    %p84 = por %p82, %p83
    %p86 = scmp.ne.s32.totalorder %s71, %s85
    %p87 = scmp.eq.s32.totalorder %s19, 0
    %p88 = por %p86, %p87
    %s90 = sadd.s32 %s89, 1
    %p93 = scmp.eq.s32.totalorder %s13, 1
    %p94 = scmp.ne.s32.totalorder %s89, %s91
    %p95 = scmp.eq.s32.totalorder %s13, 0
    %p96 = por %p94, %p95
    %p97 = scmp.ne.s32.totalorder %s89, %s91
    %p98 = scmp.eq.s32.totalorder %s18, 1
    %p99 = por %p97, %p98
    %p100 = scmp.ne.s32.totalorder %s91, %s92
    %p101 = scmp.eq.s32.totalorder %s18, 0
    %p102 = por %p100, %p101
    %p103 = scmp.ne.s32.totalorder %s91, %s92
    %p104 = scmp.eq.s32.totalorder %s19, 1
    %p105 = por %p103, %p104
    %p107 = scmp.ne.s32.totalorder %s92, %s106
    %p108 = scmp.eq.s32.totalorder %s19, 0
    %p109 = por %p107, %p108
    %s111 = sadd.s32 %s110, 1
    %p114 = scmp.eq.s32.totalorder %s13, 1
    %p115 = scmp.ne.s32.totalorder %s110, %s112
    %p116 = scmp.eq.s32.totalorder %s13, 0
    %p117 = por %p115, %p116
    %p118 = scmp.ne.s32.totalorder %s110, %s112
    %p119 = scmp.eq.s32.totalorder %s18, 1
    %p120 = por %p118, %p119
    %p121 = scmp.ne.s32.totalorder %s112, %s113
    %p122 = scmp.eq.s32.totalorder %s18, 0
    %p123 = por %p121, %p122
    %p124 = scmp.ne.s32.totalorder %s112, %s113
    %p125 = scmp.eq.s32.totalorder %s19, 1
    %p126 = por %p124, %p125
    %p128 = scmp.ne.s32.totalorder %s113, %s127
    %p129 = scmp.eq.s32.totalorder %s19, 0
    %p130 = por %p128, %p129
    %s132 = sadd.s32 %s131, 1
    %p135 = scmp.eq.s32.totalorder %s13, 1
    %p136 = scmp.ne.s32.totalorder %s131, %s133
    %p137 = scmp.eq.s32.totalorder %s13, 0
    %p138 = por %p136, %p137
    %p139 = scmp.ne.s32.totalorder %s131, %s133
    %p140 = scmp.eq.s32.totalorder %s18, 1
    %p141 = por %p139, %p140
    %p142 = scmp.ne.s32.totalorder %s133, %s134
    %p143 = scmp.eq.s32.totalorder %s18, 0
    %p144 = por %p142, %p143
    %p145 = scmp.ne.s32.totalorder %s133, %s134
    %p146 = scmp.eq.s32.totalorder %s19, 1
    %p147 = por %p145, %p146
    %p149 = scmp.ne.s32.totalorder %s134, %s148
    %p150 = scmp.eq.s32.totalorder %s19, 0
    %p151 = por %p149, %p150
    %s153 = sadd.s32 %s152, 1
    %p156 = scmp.eq.s32.totalorder %s13, 1
    %p157 = scmp.ne.s32.totalorder %s152, %s154
    %p158 = scmp.eq.s32.totalorder %s13, 0
    %p159 = por %p157, %p158
    %p160 = scmp.ne.s32.totalorder %s152, %s154
    %p161 = scmp.eq.s32.totalorder %s18, 1
    %p162 = por %p160, %p161
    %p163 = scmp.ne.s32.totalorder %s154, %s155
    %p164 = scmp.eq.s32.totalorder %s18, 0
    %p165 = por %p163, %p164
    %p166 = scmp.ne.s32.totalorder %s154, %s155
    %p167 = scmp.eq.s32.totalorder %s19, 1
    %p168 = por %p166, %p167
    %p170 = scmp.ne.s32.totalorder %s155, %s169
    %p171 = scmp.eq.s32.totalorder %s19, 0
    %p172 = por %p170, %p171
    %s173 = ssub.s32 %s13, %s20
    %p174 = scmp.eq.s32.totalorder %s173, 0
    %s176 = sadd.s32 %s175, 1
    %s177 = scalar_select %p174, %s175, %s176
    %p180 = pneg %p174
    %p181 = scmp.eq.s32.totalorder %s13, 1
    %p182 = por %p180, %p181
    %p183 = scmp.ne.s32.totalorder %s175, %s178
    %p184 = scmp.eq.s32.totalorder %s13, 0
    %p185 = por %p183, %p184
    %p186 = scmp.ne.s32.totalorder %s175, %s178
    %p187 = scmp.eq.s32.totalorder %s18, 1
    %p188 = por %p186, %p187
    %p189 = scmp.ne.s32.totalorder %s178, %s179
    %p190 = scmp.eq.s32.totalorder %s18, 0
    %p191 = por %p189, %p190
    %p192 = scmp.ne.s32.totalorder %s178, %s179
    %p193 = scmp.eq.s32.totalorder %s19, 1
    %p194 = por %p192, %p193
    %p196 = scmp.ne.s32.totalorder %s179, %s195
    %p197 = scmp.eq.s32.totalorder %s19, 0
    %p198 = por %p196, %p197
    %p199 = scmp.le.s32.totalorder 1, %s13
    %p200 = scmp.lt.s32.totalorder %s13, 3
    %p201 = pnand %p199, %p200
    %p202 = pneg %p201
    // Predicated region
    $region9: #{fop_critic_forward.1} parent=5 // pred_check
      _
    $region10: #{fop_critic_forward.1} parent=5 // pred_check_branch
      %204 = sbr.rel (%p201) target = $region12
    $region11: #{fop_critic_forward.1} parent=5 // pred_region
      %s205 = ssub.s32 %s13, 1
      // Predicated region
      $region13: #{fop_critic_forward.1} parent=11 // pred_check
        %p206 = pneg %p60
      $region14: #{fop_critic_forward.1} parent=11 // pred_check_branch
        %208 = sbr.rel (%p206) target = $region16
      $region15: #{fop_critic_forward.1} parent=11 // pred_region
        _
      $region16: #{fop_critic_forward.1} parent=11 // pred_fallthru
        _
      // Predicated region
      $region17: #{fop_critic_forward.1} parent=11 // pred_check
        %p209 = pneg %p81
      $region18: #{fop_critic_forward.1} parent=11 // pred_check_branch
        %211 = sbr.rel (%p209) target = $region20
      $region19: #{fop_critic_forward.1} parent=11 // pred_region
        _
      $region20: #{fop_critic_forward.1} parent=11 // pred_fallthru
        _
      // Predicated region
      $region21: #{fop_critic_forward.1} parent=11 // pred_check
        %p212 = pneg %p102
      $region22: #{fop_critic_forward.1} parent=11 // pred_check_branch
        %214 = sbr.rel (%p212) target = $region24
      $region23: #{fop_critic_forward.1} parent=11 // pred_region
        _
      $region24: #{fop_critic_forward.1} parent=11 // pred_fallthru
        _
      // Predicated region
      $region25: #{fop_critic_forward.1} parent=11 // pred_check
        %p215 = pneg %p123
      $region26: #{fop_critic_forward.1} parent=11 // pred_check_branch
        %217 = sbr.rel (%p215) target = $region28
      $region27: #{fop_critic_forward.1} parent=11 // pred_region
        _
      $region28: #{fop_critic_forward.1} parent=11 // pred_fallthru
        _
      // Predicated region
      $region29: #{fop_critic_forward.1} parent=11 // pred_check
        %p218 = pneg %p144
      $region30: #{fop_critic_forward.1} parent=11 // pred_check_branch
        %220 = sbr.rel (%p218) target = $region32
      $region31: #{fop_critic_forward.1} parent=11 // pred_region
        _
      $region32: #{fop_critic_forward.1} parent=11 // pred_fallthru
        _
      // Predicated region
      $region33: #{fop_critic_forward.1} parent=11 // pred_check
        %p221 = pneg %p165
      $region34: #{fop_critic_forward.1} parent=11 // pred_check_branch
        %223 = sbr.rel (%p221) target = $region36
      $region35: #{fop_critic_forward.1} parent=11 // pred_region
        _
      $region36: #{fop_critic_forward.1} parent=11 // pred_fallthru
        _
    $region12: #{fop_critic_forward.1} parent=5 // pred_fallthru
      _
    %p224 = scmp.lt.s32.totalorder %s13, 2
    // Predicated region
    $region37: #{fop_critic_forward.1} parent=5 // pred_check
      %p225 = pneg %p224
    $region38: #{fop_critic_forward.1} parent=5 // pred_check_branch
      %227 = sbr.rel (%p225) target = $region40
    $region39: #{fop_critic_forward.1} parent=5 // pred_region
      // Predicated region
      $region41: #{fop_critic_forward.1} parent=39 // pred_check
        %p228 = pneg %p33
      $region42: #{fop_critic_forward.1} parent=39 // pred_check_branch
        %230 = sbr.rel (%p228) target = $region44
      $region43: #{fop_critic_forward.1} parent=39 // pred_region
        %s231 = smul.u32 4, %s13
        %p232 = scmp.lt.s32.totalorder %s231, 7
        %s233 = scalar_select %p232, %s231, 7
        %s234 = smul.addr %s233, 8
        %s235 = scalar_lea.vmem %s0, %s234
        %s236 = smul.u32 4, %s13
      $region44: #{fop_critic_forward.1} parent=39 // pred_fallthru
        _
    $region40: #{fop_critic_forward.1} parent=5 // pred_fallthru
      _
    %p237 = scmp.le.s32.totalorder 1, %s13
    %p238 = scmp.lt.s32.totalorder %s13, 3
    %p239 = pnand %p237, %p238
    %p240 = pneg %p239
    // Predicated region
    $region45: #{fop_critic_forward.1} parent=5 // pred_check
      _
    $region46: #{fop_critic_forward.1} parent=5 // pred_check_branch
      %242 = sbr.rel (%p239) target = $region48
    $region47: #{fop_critic_forward.1} parent=5 // pred_region
      %s243 = ssub.s32 %s13, 1
      %s244 = smul.u32 4, %s18
      %p245 = scmp.lt.s32.totalorder %s244, 7
      %s246 = scalar_select %p245, %s244, 7
      %s247 = smul.addr %s246, 8
      %s248 = scalar_lea.vmem %s0, %s247
      %p249 = pneg %p39
      %p250 = pneg %p36
      %p251 = pneg %p60
      %p252 = pneg %p57
      %p253 = pneg %p81
      %p254 = pneg %p78
      %p255 = pneg %p102
      %p256 = pneg %p99
      %p257 = pneg %p123
      %p258 = pneg %p120
      %p259 = pneg %p144
      %p260 = pneg %p141
      %p261 = pneg %p165
      %p262 = pneg %p162
      %p263 = pneg %p191
      %p264 = pneg %p188
      %s265 = smul.u32 4, %s18
      %p266 = scmp.lt.s32.totalorder %s265, 7
      %s267 = scalar_select %p266, %s265, 7
      %s268 = smul.addr %s267, 8
      %s269 = scalar_lea.vmem %s7, %s268
      %s270 = smul.u32 4, %s18
      %p271 = scmp.lt.s32.totalorder %s270, 7
      %s272 = scalar_select %p271, %s270, 7
      %s273 = smul.addr %s272, 8
      %s274 = scalar_lea.vmem %s0, %s273
      %s275 = smul.u32 4, %s18
      %s276 = smul.u32 4, %s18
      %p277 = scmp.lt.s32.totalorder %s276, 7
      %s278 = scalar_select %p277, %s276, 7
      %s279 = smul.addr %s278, 8
      %s280 = scalar_lea.vmem %s7, %s279
      %s281 = smul.u32 4, %s18
      %v282 = vld [vmem:[%s274] sm:$0xff]
      %v283 = vld [vmem:[%s274 + $0x8] sm:$0xff]
      %v284 = vld [vmem:[%s274 + $0x10] sm:$0xff]
      %v285 = vld [vmem:[%s274 + $0x18] sm:$0xff]
      %v286 = vld [vmem:[%s1] sm:$0xff]
      %v287 = vld [vmem:[%s1 + $0x8] sm:$0xff]
      %v288 = vld [vmem:[%s1 + $0x10] sm:$0xff]
      %v289 = vld [vmem:[%s1 + $0x18] sm:$0xff]
      %v290 = vld [vmem:[%s2] sm:$0xff]
      %v291 = vld [vmem:[%s2 + $0x8] sm:$0xff]
      %v292 = vld [vmem:[%s2 + $0x10] sm:$0xff]
      %v293 = vld [vmem:[%s2 + $0x18] sm:$0xff]
      %vm294 = vcmask 261120
      %v296 = vsel %vm294, %v282, 0
      %v299 = vsel %vm294, %v283, 0
      %v302 = vsel %vm294, %v284, 0
      %v305 = vsel %vm294, %v285, 0
      %307 = vmatprep.subr.mxu0 0.0
      %308 = vmatpush1.msra.mxu0 %v286
      %309 = vmatprep.subr.mxu0 0.0
      %310 = vmatpush1.msra.mxu0 %v287
      %311 = vmatprep.subr.mxu0 0.0
      %312 = vmatpush1.msra.mxu0 %v288
      %313 = vmatprep.subr.mxu0 0.0
      %314 = vmatpush1.msra.mxu0 %v289
      %315 = vmatprep.subr.mxu0 0.0
      %316 = vmatpush1.msra.mxu0 0.0
      %317 = vmatprep.subr.mxu0 0.0
      %318 = vmatpush1.msra.mxu0 0.0
      %319 = vmatprep.subr.mxu0 0.0
      %320 = vmatpush1.msra.mxu0 0.0
      %321 = vmatprep.subr.mxu0 0.0
      %322 = vmatpush1.msra.mxu0 0.0
      %323 = vmatprep.subr.mxu0 0.0
      %324 = vmatpush1.msra.mxu0 0.0
      %325 = vmatprep.subr.mxu0 0.0
      %326 = vmatpush1.msra.mxu0 0.0
      %327 = vmatprep.subr.mxu0 0.0
      %328 = vmatpush1.msra.mxu0 0.0
      %329 = vmatprep.subr.mxu0 0.0
      %330 = vmatpush1.msra.mxu0 0.0
      %331 = vmatprep.subr.mxu0 0.0
      %332 = vmatpush1.msra.mxu0 0.0
      %333 = vmatprep.subr.mxu0 0.0
      %334 = vmatpush1.msra.mxu0 0.0
      %335 = vmatprep.subr.mxu0 0.0
      %336 = vmatpush1.msra.mxu0 0.0
      %337 = vmatprep.subr.mxu0 0.0
      %338 = vmatpush1.msra.mxu0 0.0
      %339 = vmatprep.subr.mxu0 0.0
      %340 = vmatpush1.msra.mxu0 0.0
      %341 = vmatprep.subr.mxu0 0.0
      %342 = vmatpush1.msra.mxu0 0.0
      %343 = vmatprep.subr.mxu0 0.0
      %344 = vmatpush1.msra.mxu0 0.0
      %345 = vmatprep.subr.mxu0 0.0
      %346 = vmatpush1.msra.mxu0 0.0
      %347 = vmatprep.subr.mxu0 0.0
      %348 = vmatpush1.msra.mxu0 0.0
      %349 = vmatprep.subr.mxu0 0.0
      %350 = vmatpush1.msra.mxu0 0.0
      %351 = vmatprep.subr.mxu0 0.0
      %352 = vmatpush1.msra.mxu0 0.0
      %353 = vmatprep.subr.mxu0 0.0
      %354 = vmatpush1.msra.mxu0 0.0
      %355 = vmatprep.subr.mxu0 0.0
      %356 = vmatpush1.msra.mxu0 0.0
      %357 = vmatprep.subr.mxu0 0.0
      %358 = vmatpush1.msra.mxu0 0.0
      %359 = vmatprep.subr.mxu0 0.0
      %360 = vmatpush1.msra.mxu0 0.0
      %361 = vmatprep.subr.mxu0 0.0
      %362 = vmatpush1.msra.mxu0 0.0
      %363 = vmatprep.subr.mxu0 0.0
      %364 = vmatpush1.msra.mxu0 0.0
      %365 = vmatprep.subr.mxu0 0.0
      %366 = vmatpush1.msra.mxu0 0.0
      %367 = vmatprep.subr.mxu0 0.0
      %368 = vmatpush1.msra.mxu0 0.0
      %369 = vmatprep.subr.mxu0 0.0
      %370 = vmatpush1.msra.mxu0 0.0
      %371 = vmatprep.mubr.f32.mxu0 0.0
      %372 = vmatmul.mubr.f32.gmra.mrb[0].mxu0 %v296
      %v373 = vpop.f32.mrb[0].mxu0
      %v374 = vadd.f32 %v290, %v373
      %v375 = vpop.f32.mrb[0].mxu0
      %376 = vmatprep.mubr.f32.mxu0 0.0
      %377 = vmatmul.mubr.f32.gmra.mrb[0].mxu0 %v299
      %v378 = vpop.f32.mrb[0].mxu0
      %v379 = vadd.f32 %v291, %v378
      %v380 = vpop.f32.mrb[0].mxu0
      %381 = vmatprep.mubr.f32.mxu0 0.0
      %382 = vmatmul.mubr.f32.gmra.mrb[0].mxu0 %v302
      %v383 = vpop.f32.mrb[0].mxu0
      %v384 = vadd.f32 %v292, %v383
      %v385 = vpop.f32.mrb[0].mxu0
      %386 = vmatprep.mubr.f32.mxu0 0.0
      %387 = vmatmul.mubr.f32.gmra.mrb[0].mxu0 %v305
      %v388 = vpop.f32.mrb[0].mxu0
      %v389 = vadd.f32 %v293, %v388
      %v390 = vpop.f32.mrb[0].mxu0
      %391 = vdwg.mxu0
      %v392 = vmax.f32 %v374, 0.0
      %v393 = vmax.f32 %v379, 0.0
      %v394 = vmax.f32 %v384, 0.0
      %v395 = vmax.f32 %v389, 0.0
      %v396 = vld [vmem:[%s3] sm:$0xff]
      %v397 = vld [vmem:[%s3 + $0x8] sm:$0xff]
      %v398 = vld [vmem:[%s3 + $0x10] sm:$0xff]
      %v399 = vld [vmem:[%s3 + $0x18] sm:$0xff]
      %v400 = vld [vmem:[%s3 + $0x20] sm:$0xff]
      %v401 = vld [vmem:[%s3 + $0x28] sm:$0xff]
      %v402 = vld [vmem:[%s3 + $0x30] sm:$0xff]
      %v403 = vld [vmem:[%s3 + $0x38] sm:$0xff]
      %v404 = vld [vmem:[%s4] sm:$0x1]
      %v406 = vlaneseq
      %v407 = vshrl.u32 %v406, 7
      %v408 = vsub.s32 0, %v407
      %v409 = vrot.slane %v404, %v408
      %vm411 = vcmask 523264
      %v413 = vsel %vm411, %v392, 0
      %v416 = vsel %vm411, %v393, 0
      %v419 = vsel %vm411, %v394, 0
      %v422 = vsel %vm411, %v395, 0
      %424 = vmatprep.subr.mxu0 0.0
      %425 = vmatpush1.msra.mxu0 %v396
      %426 = vmatprep.subr.mxu0 0.0
      %427 = vmatpush1.msra.mxu0 %v397
      %428 = vmatprep.subr.mxu0 0.0
      %429 = vmatpush1.msra.mxu0 %v398
      %430 = vmatprep.subr.mxu0 0.0
      %431 = vmatpush1.msra.mxu0 %v399
      %432 = vmatprep.subr.mxu0 0.0
      %433 = vmatpush1.msra.mxu0 %v400
      %434 = vmatprep.subr.mxu0 0.0
      %435 = vmatpush1.msra.mxu0 %v401
      %436 = vmatprep.subr.mxu0 0.0
      %437 = vmatpush1.msra.mxu0 %v402
      %438 = vmatprep.subr.mxu0 0.0
      %439 = vmatpush1.msra.mxu0 %v403
      %440 = vmatprep.subr.mxu0 0.0
      %441 = vmatpush1.msra.mxu0 0.0
      %442 = vmatprep.subr.mxu0 0.0
      %443 = vmatpush1.msra.mxu0 0.0
      %444 = vmatprep.subr.mxu0 0.0
      %445 = vmatpush1.msra.mxu0 0.0
      %446 = vmatprep.subr.mxu0 0.0
      %447 = vmatpush1.msra.mxu0 0.0
      %448 = vmatprep.subr.mxu0 0.0
      %449 = vmatpush1.msra.mxu0 0.0
      %450 = vmatprep.subr.mxu0 0.0
      %451 = vmatpush1.msra.mxu0 0.0
      %452 = vmatprep.subr.mxu0 0.0
      %453 = vmatpush1.msra.mxu0 0.0
      %454 = vmatprep.subr.mxu0 0.0
      %455 = vmatpush1.msra.mxu0 0.0
      %456 = vmatprep.subr.mxu0 0.0
      %457 = vmatpush1.msra.mxu0 0.0
      %458 = vmatprep.subr.mxu0 0.0
      %459 = vmatpush1.msra.mxu0 0.0
      %460 = vmatprep.subr.mxu0 0.0
      %461 = vmatpush1.msra.mxu0 0.0
      %462 = vmatprep.subr.mxu0 0.0
      %463 = vmatpush1.msra.mxu0 0.0
      %464 = vmatprep.subr.mxu0 0.0
      %465 = vmatpush1.msra.mxu0 0.0
      %466 = vmatprep.subr.mxu0 0.0
      %467 = vmatpush1.msra.mxu0 0.0
      %468 = vmatprep.subr.mxu0 0.0
      %469 = vmatpush1.msra.mxu0 0.0
      %470 = vmatprep.subr.mxu0 0.0
      %471 = vmatpush1.msra.mxu0 0.0
      %472 = vmatprep.subr.mxu0 0.0
      %473 = vmatpush1.msra.mxu0 0.0
      %474 = vmatprep.subr.mxu0 0.0
      %475 = vmatpush1.msra.mxu0 0.0
      %476 = vmatprep.subr.mxu0 0.0
      %477 = vmatpush1.msra.mxu0 0.0
      %478 = vmatprep.subr.mxu0 0.0
      %479 = vmatpush1.msra.mxu0 0.0
      %480 = vmatprep.subr.mxu0 0.0
      %481 = vmatpush1.msra.mxu0 0.0
      %482 = vmatprep.subr.mxu0 0.0
      %483 = vmatpush1.msra.mxu0 0.0
      %484 = vmatprep.subr.mxu0 0.0
      %485 = vmatpush1.msra.mxu0 0.0
      %486 = vmatprep.subr.mxu0 0.0
      %487 = vmatpush1.msra.mxu0 0.0
      %488 = vmatprep.mubr.f32.mxu0 0.0
      %489 = vmatmul.mubr.f32.gmra.mrb[0].mxu0 %v413
      %v490 = vpop.f32.mrb[0].mxu0
      %v491 = vadd.f32 %v409, %v490
      %v492 = vpop.f32.mrb[0].mxu0
      %493 = vmatprep.mubr.f32.mxu0 0.0
      %494 = vmatmul.mubr.f32.gmra.mrb[0].mxu0 %v416
      %v495 = vpop.f32.mrb[0].mxu0
      %v496 = vadd.f32 %v409, %v495
      %v497 = vpop.f32.mrb[0].mxu0
      %498 = vmatprep.mubr.f32.mxu0 0.0
      %499 = vmatmul.mubr.f32.gmra.mrb[0].mxu0 %v419
      %v500 = vpop.f32.mrb[0].mxu0
      %v501 = vadd.f32 %v409, %v500
      %v502 = vpop.f32.mrb[0].mxu0
      %503 = vmatprep.mubr.f32.mxu0 0.0
      %504 = vmatmul.mubr.f32.gmra.mrb[0].mxu0 %v422
      %v505 = vpop.f32.mrb[0].mxu0
      %v506 = vadd.f32 %v409, %v505
      %v507 = vpop.f32.mrb[0].mxu0
      %508 = vdwg.mxu0
      %v509 = vmax.f32 %v491, 0.0
      %v510 = vmax.f32 %v496, 0.0
      %v511 = vmax.f32 %v501, 0.0
      %v512 = vmax.f32 %v506, 0.0
      %v513 = vld [vmem:[%s5] sm:$0xff]
      %v514 = vld [vmem:[%s5 + $0x8] sm:$0xff]
      %v515 = vld [vmem:[%s5 + $0x10] sm:$0xff]
      %v516 = vld [vmem:[%s5 + $0x18] sm:$0xff]
      %v517 = vld [vmem:[%s5 + $0x20] sm:$0xff]
      %v518 = vld [vmem:[%s5 + $0x28] sm:$0xff]
      %v519 = vld [vmem:[%s5 + $0x30] sm:$0xff]
      %v520 = vld [vmem:[%s5 + $0x38] sm:$0xff]
      %v521 = vld [vmem:[%s6] sm:$0x1]
      %v523 = vlaneseq
      %v524 = vshrl.u32 %v523, 7
      %v525 = vsub.s32 0, %v524
      %v526 = vrot.slane %v521, %v525
      %v529 = vsel %vm411, %v509, 0
      %v532 = vsel %vm411, %v510, 0
      %v535 = vsel %vm411, %v511, 0
      %v538 = vsel %vm411, %v512, 0
      %540 = vmatprep.subr.mxu0 0.0
      %541 = vmatpush1.msra.mxu0 %v513
      %542 = vmatprep.subr.mxu0 0.0
      %543 = vmatpush1.msra.mxu0 %v514
      %544 = vmatprep.subr.mxu0 0.0
      %545 = vmatpush1.msra.mxu0 %v515
      %546 = vmatprep.subr.mxu0 0.0
      %547 = vmatpush1.msra.mxu0 %v516
      %548 = vmatprep.subr.mxu0 0.0
      %549 = vmatpush1.msra.mxu0 %v517
      %550 = vmatprep.subr.mxu0 0.0
      %551 = vmatpush1.msra.mxu0 %v518
      %552 = vmatprep.subr.mxu0 0.0
      %553 = vmatpush1.msra.mxu0 %v519
      %554 = vmatprep.subr.mxu0 0.0
      %555 = vmatpush1.msra.mxu0 %v520
      %556 = vmatprep.subr.mxu0 0.0
      %557 = vmatpush1.msra.mxu0 0.0
      %558 = vmatprep.subr.mxu0 0.0
      %559 = vmatpush1.msra.mxu0 0.0
      %560 = vmatprep.subr.mxu0 0.0
      %561 = vmatpush1.msra.mxu0 0.0
      %562 = vmatprep.subr.mxu0 0.0
      %563 = vmatpush1.msra.mxu0 0.0
      %564 = vmatprep.subr.mxu0 0.0
      %565 = vmatpush1.msra.mxu0 0.0
      %566 = vmatprep.subr.mxu0 0.0
      %567 = vmatpush1.msra.mxu0 0.0
      %568 = vmatprep.subr.mxu0 0.0
      %569 = vmatpush1.msra.mxu0 0.0
      %570 = vmatprep.subr.mxu0 0.0
      %571 = vmatpush1.msra.mxu0 0.0
      %572 = vmatprep.subr.mxu0 0.0
      %573 = vmatpush1.msra.mxu0 0.0
      %574 = vmatprep.subr.mxu0 0.0
      %575 = vmatpush1.msra.mxu0 0.0
      %576 = vmatprep.subr.mxu0 0.0
      %577 = vmatpush1.msra.mxu0 0.0
      %578 = vmatprep.subr.mxu0 0.0
      %579 = vmatpush1.msra.mxu0 0.0
      %580 = vmatprep.subr.mxu0 0.0
      %581 = vmatpush1.msra.mxu0 0.0
      %582 = vmatprep.subr.mxu0 0.0
      %583 = vmatpush1.msra.mxu0 0.0
      %584 = vmatprep.subr.mxu0 0.0
      %585 = vmatpush1.msra.mxu0 0.0
      %586 = vmatprep.subr.mxu0 0.0
      %587 = vmatpush1.msra.mxu0 0.0
      %588 = vmatprep.subr.mxu0 0.0
      %589 = vmatpush1.msra.mxu0 0.0
      %590 = vmatprep.subr.mxu0 0.0
      %591 = vmatpush1.msra.mxu0 0.0
      %592 = vmatprep.subr.mxu0 0.0
      %593 = vmatpush1.msra.mxu0 0.0
      %594 = vmatprep.subr.mxu0 0.0
      %595 = vmatpush1.msra.mxu0 0.0
      %596 = vmatprep.subr.mxu0 0.0
      %597 = vmatpush1.msra.mxu0 0.0
      %598 = vmatprep.subr.mxu0 0.0
      %599 = vmatpush1.msra.mxu0 0.0
      %600 = vmatprep.subr.mxu0 0.0
      %601 = vmatpush1.msra.mxu0 0.0
      %602 = vmatprep.subr.mxu0 0.0
      %603 = vmatpush1.msra.mxu0 0.0
      %604 = vmatprep.mubr.f32.mxu0 0.0
      %605 = vmatmul.mubr.f32.gmra.mrb[0].mxu0 %v529
      %v606 = vpop.f32.mrb[0].mxu0
      %v607 = vadd.f32 %v526, %v606
      %v608 = vpop.f32.mrb[0].mxu0
      %609 = vmatprep.mubr.f32.mxu0 0.0
      %610 = vmatmul.mubr.f32.gmra.mrb[0].mxu0 %v532
      %v611 = vpop.f32.mrb[0].mxu0
      %v612 = vadd.f32 %v526, %v611
      %v613 = vpop.f32.mrb[0].mxu0
      %614 = vmatprep.mubr.f32.mxu0 0.0
      %615 = vmatmul.mubr.f32.gmra.mrb[0].mxu0 %v535
      %v616 = vpop.f32.mrb[0].mxu0
      %v617 = vadd.f32 %v526, %v616
      %v618 = vpop.f32.mrb[0].mxu0
      %619 = vmatprep.mubr.f32.mxu0 0.0
      %620 = vmatmul.mubr.f32.gmra.mrb[0].mxu0 %v538
      %v621 = vpop.f32.mrb[0].mxu0
      %v622 = vadd.f32 %v526, %v621
      %v623 = vpop.f32.mrb[0].mxu0
      %624 = vdwg.mxu0
      %vm625 = vcmask 64512
      %626 = vst.msk [vmem:[%s280] sm:$0xff] %vm625, %v607
      %627 = vst.msk [vmem:[%s280 + $0x8] sm:$0xff] %vm625, %v612
      %628 = vst.msk [vmem:[%s280 + $0x10] sm:$0xff] %vm625, %v617
      %629 = vst.msk [vmem:[%s280 + $0x18] sm:$0xff] %vm625, %v622
      %s630 = smul.u32 4, %s18
      %p631 = scmp.lt.s32.totalorder %s630, 7
      %s632 = scalar_select %p631, %s630, 7
      %s633 = smul.addr %s632, 8
      %s634 = scalar_lea.vmem %s7, %s633
      // Predicated region
      $region49: #{fop_critic_forward.1} parent=47 // pred_check
        %p635 = pneg %p188
      $region50: #{fop_critic_forward.1} parent=47 // pred_check_branch
        %637 = sbr.rel (%p635) target = $region52
      $region51: #{fop_critic_forward.1} parent=47 // pred_region
        %s638 = smul.u32 4, %s18
      $region52: #{fop_critic_forward.1} parent=47 // pred_fallthru
        _
    $region48: #{fop_critic_forward.1} parent=5 // pred_fallthru
      _
    %p639 = scmp.le.s32.totalorder 2, %s13
    // Predicated region
    $region53: #{fop_critic_forward.1} parent=5 // pred_check
      %p640 = pneg %p639
    $region54: #{fop_critic_forward.1} parent=5 // pred_check_branch
      %642 = sbr.rel (%p640) target = $region56
    $region55: #{fop_critic_forward.1} parent=5 // pred_region
      %s643 = ssub.s32 %s13, 2
      // Predicated region
      $region57: #{fop_critic_forward.1} parent=55 // pred_check
        %p644 = pneg %p194
      $region58: #{fop_critic_forward.1} parent=55 // pred_check_branch
        %646 = sbr.rel (%p644) target = $region60
      $region59: #{fop_critic_forward.1} parent=55 // pred_region
        %s647 = smul.u32 4, %s19
        %p648 = scmp.lt.s32.totalorder %s647, 7
        %s649 = scalar_select %p648, %s647, 7
        %s650 = smul.addr %s649, 8
        %s651 = scalar_lea.vmem %s7, %s650
      $region60: #{fop_critic_forward.1} parent=55 // pred_fallthru
        _
    $region56: #{fop_critic_forward.1} parent=5 // pred_fallthru
      _
  $region6: #{fop_critic_forward.1} parent=0 // loop_footer
    %s17 = sadd.s32 1, %s13
  $region7: #{fop_critic_forward.1} parent=0 // loop_footer_branch
    %12 = sbr.rel target = $region3
  $region8: #{fop_critic_forward.1} parent=0 // loop_exit
    _

</llo_original>
